<compile_context>
chip_gen: v7x
topology: tpu7x:2x2x1
jax: 0.10.0
libtpu: 0.0.40
codegen_flags: <defaults>
</compile_context>

<pallas_src>
import numpy as np
import jax
import jax.numpy as jnp
from jax import lax
from jax.experimental import pallas as pl
from jax.experimental.pallas import tpu as pltpu

# ----- concrete shapes for the synthetic model -----
B, C_IN, H, W = 2, 4, 16, 16
C_OUT, K, POOL = 8, 3, 4
HP, WP = H // POOL, W // POOL          # 4, 4
N_FEAT = C_OUT * HP * WP               # 128
N_CLASSES = 10

HPAD, WPAD = H + 2, W + 2              # 18, 18  (1-pixel zero border)
XROWS = B * HPAD                       # 36  rows of the input slab (b,h_pad)
XCOLS = C_IN * WPAD                    # 72  cols of the input slab (c,w_pad)
ZROWS = XROWS - 2                      # 34  conv-output rows (2 junk rows between batches)
YCOLS = W * C_OUT                      # 128 conv-output cols (w,co)  -> lane dense
PROWS = B * HP                         # 8   pooled rows (b,ph)
PCOLS = WP * C_OUT                     # 32  pooled cols (pw,co)
TCOLS = HP * N_CLASSES                 # 40  (ph,class) product cols
LANES = 128

# ----- packed constant buffer layout (row offsets, all multiples of 8) -----
A_OFF = 0                              # 216 rows: banded conv matrices, one 72-row block per kh
CP_OFF = A_OFF + K * XCOLS             # 216: column (width) pooling, 128 rows x 32 cols
RP_OFF = CP_OFF + YCOLS                # 344: row (height) pooling, 8 rows x 34 cols
U_OFF = RP_OFF + 8                     # 352: regrouped classifier weight, 32 rows x 40 cols
MK_OFF = U_OFF + PCOLS                 # 384: pooled-row selection mask, 8 rows x 40 cols
CS_OFF = MK_OFF + 8                    # 392: class-block sum, 40 rows x 128 cols (cols 0..9 valid)
RS_OFF = CS_OFF + TCOLS                # 432: batch row-sum, 8 rows x 8 cols (rows 0..1 valid)
BC_OFF = RS_OFF + 8                    # 440: conv bias broadcast row (128 cols)
BF_OFF = BC_OFF + 8                    # 448: classifier bias row (cols 0..9 valid)
CONST_ROWS = BF_OFF + 8                # 456


# --------------- one-time parameter re-layout (init time, NOT per call) ---------------
def prepare_params(params):
    w_conv = np.asarray(params["w_conv"], np.float32)   # (C_OUT, C_IN, K, K)
    b_conv = np.asarray(params["b_conv"], np.float32)   # (C_OUT,)
    w_fc = np.asarray(params["w_fc"], np.float32)       # (N_CLASSES, N_FEAT)
    b_fc = np.asarray(params["b_fc"], np.float32)       # (N_CLASSES,)

    cbuf = np.zeros((CONST_ROWS, LANES), np.float32)

    # Banded conv matrices: A[kh*72 + c*18 + (w+kw), w*8 + co] = w_conv[co, c, kh, kw].
    # The kw (width) shift is absorbed into the band; only the kh (height) shift
    # remains and is handled by statically shifted row views in the kernel.
    for kh in range(K):
        for c in range(C_IN):
            for w in range(W):
                for kw in range(K):
                    row = A_OFF + kh * XCOLS + c * WPAD + (w + kw)
                    cbuf[row, w * C_OUT:(w + 1) * C_OUT] = w_conv[:, c, kh, kw]

    # Width pooling: CP[w*8+co, pw*8+co] = 1/4 for 4*pw <= w <= 4*pw+3
    for w in range(W):
        pw = w // POOL
        for co in range(C_OUT):
            cbuf[CP_OFF + w * C_OUT + co, pw * C_OUT + co] = 0.25

    # Height pooling: RP[b*4+ph, b*18 + 4*ph + dh] = 1/4 (ignores the 2 junk conv rows)
    for b in range(B):
        for ph in range(HP):
            for dh in range(POOL):
                cbuf[RP_OFF + b * HP + ph, b * HPAD + POOL * ph + dh] = 0.25

    # Classifier weight regrouped so the torch NCHW flatten is absorbed:
    #   U[pw*8+co, ph*10+n] = w_fc[n, co*16 + ph*4 + pw]
    for pw in range(WP):
        for co in range(C_OUT):
            for ph in range(HP):
                cbuf[U_OFF + pw * C_OUT + co, ph * N_CLASSES:(ph + 1) * N_CLASSES] = \
                    w_fc[:, co * HP * WP + ph * WP + pw]

    # mask[b*4+ph', ph*10+n] = [ph == ph']
    for b in range(B):
        for ph in range(HP):
            cbuf[MK_OFF + b * HP + ph, ph * N_CLASSES:(ph + 1) * N_CLASSES] = 1.0

    # csum[ph*10+n, n'] = [n == n']   (columns 10..127 stay zero -> lane-dense output)
    for ph in range(HP):
        cbuf[CS_OFF + ph * N_CLASSES:CS_OFF + (ph + 1) * N_CLASSES, :N_CLASSES] = \
            np.eye(N_CLASSES, dtype=np.float32)

    # rsum[b, b*4+ph] = 1   (rows 2..7 zero so the output slab's extra rows are junk-only)
    for b in range(B):
        cbuf[RS_OFF + b, b * HP:(b + 1) * HP] = 1.0

    # conv bias broadcast row [w*8+co] = b_conv[co]; classifier bias row
    cbuf[BC_OFF, :YCOLS] = np.tile(b_conv, W)
    cbuf[BF_OFF, :N_CLASSES] = b_fc

    return jnp.asarray(cbuf)


# ----------------- single fused, grid-less Pallas kernel -----------------
def _fused_kernel(x_ref, c_ref, out_ref):
    # (1) 3x3 conv (padding=1) as 3 accumulated banded matmuls over row-shifted views:
    #     z[b*18+h, w*8+co] = sum_kh x2d[b*18+h+kh, :] @ A_kh
    z = jnp.zeros((ZROWS, YCOLS), jnp.float32)
    for kh in range(K):                                   # static unrolled loop
        z = z + jnp.dot(x_ref[kh:kh + ZROWS, :],
                        c_ref[A_OFF + kh * XCOLS:A_OFF + (kh + 1) * XCOLS, :],
                        preferred_element_type=jnp.float32)
    y = jnp.maximum(z + c_ref[BC_OFF:BC_OFF + 1, :], 0.0)  # bias + ReLU, (34,128)

    # (2) 4x4 average pool = height-reduce matmul then width-reduce matmul
    zr = jnp.dot(c_ref[RP_OFF:RP_OFF + PROWS, 0:ZROWS], y,
                 preferred_element_type=jnp.float32)        # (8,128)
    pooled = jnp.dot(zr, c_ref[CP_OFF:CP_OFF + YCOLS, 0:PCOLS],
                     preferred_element_type=jnp.float32)    # (8,32)

    # (3) classifier with the NCHW flatten folded into mask / block-sum matmuls
    t = jnp.dot(pooled, c_ref[U_OFF:U_OFF + PCOLS, 0:TCOLS],
                preferred_element_type=jnp.float32)         # (8,40)
    zsel = jnp.dot(t * c_ref[MK_OFF:MK_OFF + PROWS, 0:TCOLS],
                   c_ref[CS_OFF:CS_OFF + TCOLS, :],
                   preferred_element_type=jnp.float32)      # (8,128), cols 0..9 valid
    out = jnp.dot(c_ref[RS_OFF:RS_OFF + 8, 0:8], zsel,
                  preferred_element_type=jnp.float32)       # (8,128)

    # lane-dense unmasked store; wrapper slices [:2, :10]
    out_ref[...] = out + c_ref[BF_OFF:BF_OFF + 1, :]


_VMEM = pl.BlockSpec(memory_space=pltpu.MemorySpace.VMEM)


def _fused_forward(x2d, cbuf):
    return pl.pallas_call(
        _fused_kernel,
        out_shape=jax.ShapeDtypeStruct((8, LANES), jnp.float32),
        in_specs=[_VMEM, _VMEM],
        out_specs=_VMEM,
    )(x2d, cbuf)


# ----------------- jitted per-call wrapper (only input prep + kernel) -----------------
@jax.jit
def custom_model_forward(x_nchw, cbuf):
    # zero-pad border and lay out as rows=(b, h_pad), cols=(c, w_pad): (36, 72), ~18 KiB
    x_pad = jnp.pad(x_nchw.astype(jnp.float32), ((0, 0), (0, 0), (1, 1), (1, 1)))
    x2d = jnp.transpose(x_pad, (0, 2, 1, 3)).reshape(XROWS, XCOLS)
    out_slab = _fused_forward(x2d, cbuf)
    return out_slab[:B, :N_CLASSES]


# ----------------- pure-JAX reference for validation -----------------
def reference_forward(x_nchw, params):
    y = lax.conv_general_dilated(
        x_nchw, params["w_conv"], window_strides=(1, 1),
        padding=((1, 1), (1, 1)),
        dimension_numbers=("NCHW", "OIHW", "NCHW"),
    )
    y = jnp.maximum(y + params["b_conv"].reshape(1, C_OUT, 1, 1), 0.0)
    y = y.reshape(B, C_OUT, HP, POOL, WP, POOL).mean(axis=(3, 5))
    y = y.reshape(B, -1)
    return y @ params["w_fc"].T + params["b_fc"]


if __name__ == "__main__":
    key = jax.random.PRNGKey(0)
    k_x, k_wc, k_bc, k_wf, k_bf = jax.random.split(key, 5)

    x = jax.random.normal(k_x, (B, C_IN, H, W), dtype=jnp.float32)
    params = {
        "w_conv": 0.1 * jax.random.normal(k_wc, (C_OUT, C_IN, K, K), jnp.float32),
        "b_conv": 0.1 * jax.random.normal(k_bc, (C_OUT,), jnp.float32),
        "w_fc": 0.1 * jax.random.normal(k_wf, (N_CLASSES, N_FEAT), jnp.float32),
        "b_fc": 0.1 * jax.random.normal(k_bf, (N_CLASSES,), jnp.float32),
    }

    # one-time parameter re-layout (init time); per-call path touches only x
    cbuf = prepare_params(params)

    out = jax.block_until_ready(custom_model_forward(x, cbuf))
    ref = jax.block_until_ready(reference_forward(x, params))

    assert out.shape == (B, N_CLASSES)
    assert np.allclose(np.asarray(out), np.asarray(ref), rtol=1e-4, atol=1e-4), (
        "mismatch vs reference"
    )
    print("KERNEL_OK")
</pallas_src>

<mosaic_0001>
module attributes {stable_mosaic.version = 11 : i64} {
  func.func @_fused_kernel(%arg0: memref<36x72xf32, #tpu.memory_space<vmem>>, %arg1: memref<456x128xf32, #tpu.memory_space<vmem>>, %arg2: memref<8x128xf32, #tpu.memory_space<vmem>>) attributes {dimension_semantics = [], scalar_prefetch = 0 : i64, scratch_operands = 0 : i64, tpu.core_type = #tpu.core_type<tc>} {
    %cst = arith.constant 0.000000e+00 : f32
    %0 = vector.broadcast %cst : f32 to vector<34x128xf32>
    %c0 = arith.constant 0 : index
    %c0_0 = arith.constant 0 : index
    %1 = vector.load %arg0[%c0, %c0_0] : memref<36x72xf32, #tpu.memory_space<vmem>>, vector<34x72xf32>
    %c0_1 = arith.constant 0 : index
    %c0_2 = arith.constant 0 : index
    %2 = vector.load %arg1[%c0_1, %c0_2] : memref<456x128xf32, #tpu.memory_space<vmem>>, vector<72x128xf32>
    %cst_3 = arith.constant dense<0.000000e+00> : vector<34x128xf32>
    %3 = tpu.matmul %1, %2, %cst_3 {dimension_numbers = #tpu.dot_dimension_numbers<[1], [0], [0], [1], [0, 0, 1, 1], [], []>} : vector<34x72xf32>, vector<72x128xf32>, vector<34x128xf32> -> vector<34x128xf32>
    %4 = arith.addf %0, %3 : vector<34x128xf32>
    %c1 = arith.constant 1 : index
    %c0_4 = arith.constant 0 : index
    %5 = vector.load %arg0[%c1, %c0_4] : memref<36x72xf32, #tpu.memory_space<vmem>>, vector<34x72xf32>
    %c72 = arith.constant 72 : index
    %c0_5 = arith.constant 0 : index
    %6 = vector.load %arg1[%c72, %c0_5] : memref<456x128xf32, #tpu.memory_space<vmem>>, vector<72x128xf32>
    %cst_6 = arith.constant dense<0.000000e+00> : vector<34x128xf32>
    %7 = tpu.matmul %5, %6, %cst_6 {dimension_numbers = #tpu.dot_dimension_numbers<[1], [0], [0], [1], [0, 0, 1, 1], [], []>} : vector<34x72xf32>, vector<72x128xf32>, vector<34x128xf32> -> vector<34x128xf32>
    %8 = arith.addf %4, %7 : vector<34x128xf32>
    %c2 = arith.constant 2 : index
    %c0_7 = arith.constant 0 : index
    %9 = vector.load %arg0[%c2, %c0_7] : memref<36x72xf32, #tpu.memory_space<vmem>>, vector<34x72xf32>
    %c144 = arith.constant 144 : index
    %c0_8 = arith.constant 0 : index
    %10 = vector.load %arg1[%c144, %c0_8] : memref<456x128xf32, #tpu.memory_space<vmem>>, vector<72x128xf32>
    %cst_9 = arith.constant dense<0.000000e+00> : vector<34x128xf32>
    %11 = tpu.matmul %9, %10, %cst_9 {dimension_numbers = #tpu.dot_dimension_numbers<[1], [0], [0], [1], [0, 0, 1, 1], [], []>} : vector<34x72xf32>, vector<72x128xf32>, vector<34x128xf32> -> vector<34x128xf32>
    %12 = arith.addf %8, %11 : vector<34x128xf32>
    %c440 = arith.constant 440 : index
    %c0_10 = arith.constant 0 : index
    %13 = vector.load %arg1[%c440, %c0_10] : memref<456x128xf32, #tpu.memory_space<vmem>>, vector<1x128xf32>
    %14 = vector.broadcast %13 : vector<1x128xf32> to vector<34x128xf32>
    %15 = arith.addf %12, %14 : vector<34x128xf32>
    %cst_11 = arith.constant 0.000000e+00 : f32
    %16 = vector.broadcast %cst_11 : f32 to vector<34x128xf32>
    %17 = arith.maximumf %15, %16 : vector<34x128xf32>
    %c344 = arith.constant 344 : index
    %c0_12 = arith.constant 0 : index
    %18 = vector.load %arg1[%c344, %c0_12] : memref<456x128xf32, #tpu.memory_space<vmem>>, vector<8x34xf32>
    %cst_13 = arith.constant dense<0.000000e+00> : vector<8x128xf32>
    %19 = tpu.matmul %18, %17, %cst_13 {dimension_numbers = #tpu.dot_dimension_numbers<[1], [0], [0], [1], [0, 0, 1, 1], [], []>} : vector<8x34xf32>, vector<34x128xf32>, vector<8x128xf32> -> vector<8x128xf32>
    %c216 = arith.constant 216 : index
    %c0_14 = arith.constant 0 : index
    %20 = vector.load %arg1[%c216, %c0_14] : memref<456x128xf32, #tpu.memory_space<vmem>>, vector<128x32xf32>
    %cst_15 = arith.constant dense<0.000000e+00> : vector<8x32xf32>
    %21 = tpu.matmul %19, %20, %cst_15 {dimension_numbers = #tpu.dot_dimension_numbers<[1], [0], [0], [1], [0, 0, 1, 1], [], []>} : vector<8x128xf32>, vector<128x32xf32>, vector<8x32xf32> -> vector<8x32xf32>
    %c352 = arith.constant 352 : index
    %c0_16 = arith.constant 0 : index
    %22 = vector.load %arg1[%c352, %c0_16] : memref<456x128xf32, #tpu.memory_space<vmem>>, vector<32x40xf32>
    %cst_17 = arith.constant dense<0.000000e+00> : vector<8x40xf32>
    %23 = tpu.matmul %21, %22, %cst_17 {dimension_numbers = #tpu.dot_dimension_numbers<[1], [0], [0], [1], [0, 0, 1, 1], [], []>} : vector<8x32xf32>, vector<32x40xf32>, vector<8x40xf32> -> vector<8x40xf32>
    %c384 = arith.constant 384 : index
    %c0_18 = arith.constant 0 : index
    %24 = vector.load %arg1[%c384, %c0_18] : memref<456x128xf32, #tpu.memory_space<vmem>>, vector<8x40xf32>
    %25 = arith.mulf %23, %24 : vector<8x40xf32>
    %c392 = arith.constant 392 : index
    %c0_19 = arith.constant 0 : index
    %26 = vector.load %arg1[%c392, %c0_19] : memref<456x128xf32, #tpu.memory_space<vmem>>, vector<40x128xf32>
    %cst_20 = arith.constant dense<0.000000e+00> : vector<8x128xf32>
    %27 = tpu.matmul %25, %26, %cst_20 {dimension_numbers = #tpu.dot_dimension_numbers<[1], [0], [0], [1], [0, 0, 1, 1], [], []>} : vector<8x40xf32>, vector<40x128xf32>, vector<8x128xf32> -> vector<8x128xf32>
    %c432 = arith.constant 432 : index
    %c0_21 = arith.constant 0 : index
    %28 = vector.load %arg1[%c432, %c0_21] : memref<456x128xf32, #tpu.memory_space<vmem>>, vector<8x8xf32>
    %cst_22 = arith.constant dense<0.000000e+00> : vector<8x128xf32>
    %29 = tpu.matmul %28, %27, %cst_22 {dimension_numbers = #tpu.dot_dimension_numbers<[1], [0], [0], [1], [0, 0, 1, 1], [], []>} : vector<8x8xf32>, vector<8x128xf32>, vector<8x128xf32> -> vector<8x128xf32>
    %c448 = arith.constant 448 : index
    %c0_23 = arith.constant 0 : index
    %30 = vector.load %arg1[%c448, %c0_23] : memref<456x128xf32, #tpu.memory_space<vmem>>, vector<1x128xf32>
    %31 = vector.broadcast %30 : vector<1x128xf32> to vector<8x128xf32>
    %32 = arith.addf %29, %31 : vector<8x128xf32>
    %c0_24 = arith.constant 0 : index
    %c0_25 = arith.constant 0 : index
    %33 = vector.load %arg2[%c0_24, %c0_25] : memref<8x128xf32, #tpu.memory_space<vmem>>, vector<8x128xf32>
    tpu.vector_store %arg2[%c0_24, %c0_25], %32 {strides = array<i32>} : memref<8x128xf32, #tpu.memory_space<vmem>>, vector<8x128xf32>,
    return
  }
}

</mosaic_0001>

<llo_original>
// kernel: custom_model_forward.1
$region0: #{custom_model_forward.1}
  #allocation0 [shape = 'u32[]', space=smem, size = 0x4, offset = 0x4, fixed_abs, tag = 'smem constant byte address 0x4 - core index']
  #allocation1 [shape = 'u32[144,128]{1,0:T(1,128)}', space=vmem, size = 0x12000, scoped, tag = 'internal scratch']
  %s0 = inlined_call_operand.vmem [shape: f32[36,72], index: 0, kind: input, shape index: {}]
  %s1 = inlined_call_operand.vmem [shape: f32[456,128], index: 1, kind: input, shape index: {}]
  %s2 = inlined_call_operand.vmem [shape: f32[8,128], index: 2, kind: output, shape index: {}]
  %s3 = sld [smem:[#allocation0]]
  $region18: #{custom_model_forward.1} parent=0
    _
  %s5 = ssub.s32 1, %s3
  %s6 = scalar_select 0, %s5, %s3
  // Predicated region
  $region2: #{custom_model_forward.1} parent=0 // pred_check
    _
  $region3: #{custom_model_forward.1} parent=0 // pred_check_branch
    %8 = sbr.rel (0) target = $region5
  $region4: #{custom_model_forward.1} parent=0 // pred_region
    _
  $region5: #{custom_model_forward.1} parent=0 // pred_fallthru
    _
  // Predicated region
  $region6: #{custom_model_forward.1} parent=0 // pred_check
    _
  $region7: #{custom_model_forward.1} parent=0 // pred_check_branch
    %10 = sbr.rel (0) target = $region9
  $region8: #{custom_model_forward.1} parent=0 // pred_region
    _
  $region9: #{custom_model_forward.1} parent=0 // pred_fallthru
    _
  %v11 = vld [vmem:[%s0] sm:$0xff]
  %v12 = vld [vmem:[%s0 + $0x8] sm:$0xff]
  %v13 = vld [vmem:[%s0 + $0x10] sm:$0xff]
  %v14 = vld [vmem:[%s0 + $0x18] sm:$0xff]
  %v15 = vld [vmem:[%s0 + $0x20] sm:$0x3]
  %v16 = vld [vmem:[%s1] sm:$0xff]
  %v17 = vld [vmem:[%s1 + $0x8] sm:$0xff]
  %v18 = vld [vmem:[%s1 + $0x10] sm:$0xff]
  %v19 = vld [vmem:[%s1 + $0x18] sm:$0xff]
  %v20 = vld [vmem:[%s1 + $0x20] sm:$0xff]
  %v21 = vld [vmem:[%s1 + $0x28] sm:$0xff]
  %v22 = vld [vmem:[%s1 + $0x30] sm:$0xff]
  %v23 = vld [vmem:[%s1 + $0x38] sm:$0xff]
  %v24 = vld [vmem:[%s1 + $0x40] sm:$0xff]
  %v25 = vld [vmem:[%s0 + $0x1] sm:$0xff]
  %v26 = vld [vmem:[%s0 + $0x9] sm:$0xff]
  %v27 = vld [vmem:[%s0 + $0x11] sm:$0xff]
  %v28 = vld [vmem:[%s0 + $0x19] sm:$0xff]
  %v29 = vld [vmem:[%s0 + $0x21] sm:$0x3]
  %v30 = vld [vmem:[%s1 + $0x48] sm:$0xff]
  %v31 = vld [vmem:[%s1 + $0x50] sm:$0xff]
  %v32 = vld [vmem:[%s1 + $0x58] sm:$0xff]
  %v33 = vld [vmem:[%s1 + $0x60] sm:$0xff]
  %v34 = vld [vmem:[%s1 + $0x68] sm:$0xff]
  %v35 = vld [vmem:[%s1 + $0x70] sm:$0xff]
  %v36 = vld [vmem:[%s1 + $0x78] sm:$0xff]
  %v37 = vld [vmem:[%s1 + $0x80] sm:$0xff]
  %v38 = vld [vmem:[%s1 + $0x88] sm:$0xff]
  %vm39 = vcmask 588800
  %v41 = vsel %vm39, %v25, 0
  %v44 = vsel %vm39, %v26, 0
  %v47 = vsel %vm39, %v27, 0
  %v50 = vsel %vm39, %v28, 0
  %v53 = vsel %vm39, %v29, 0
  %55 = vmatprep.subr.mxu0 0.0
  %56 = vmatpush1.msra.mxu0 %v30
  %57 = vmatprep.subr.mxu0 0.0
  %58 = vmatpush1.msra.mxu0 %v31
  %59 = vmatprep.subr.mxu0 0.0
  %60 = vmatpush1.msra.mxu0 %v32
  %61 = vmatprep.subr.mxu0 0.0
  %62 = vmatpush1.msra.mxu0 %v33
  %63 = vmatprep.subr.mxu0 0.0
  %64 = vmatpush1.msra.mxu0 %v34
  %65 = vmatprep.subr.mxu0 0.0
  %66 = vmatpush1.msra.mxu0 %v35
  %67 = vmatprep.subr.mxu0 0.0
  %68 = vmatpush1.msra.mxu0 %v36
  %69 = vmatprep.subr.mxu0 0.0
  %70 = vmatpush1.msra.mxu0 %v37
  %71 = vmatprep.subr.mxu0 0.0
  %72 = vmatpush1.msra.mxu0 %v38
  %73 = vmatprep.subr.mxu0 0.0
  %74 = vmatpush1.msra.mxu0 0.0
  %75 = vmatprep.subr.mxu0 0.0
  %76 = vmatpush1.msra.mxu0 0.0
  %77 = vmatprep.subr.mxu0 0.0
  %78 = vmatpush1.msra.mxu0 0.0
  %79 = vmatprep.subr.mxu0 0.0
  %80 = vmatpush1.msra.mxu0 0.0
  %81 = vmatprep.subr.mxu0 0.0
  %82 = vmatpush1.msra.mxu0 0.0
  %83 = vmatprep.subr.mxu0 0.0
  %84 = vmatpush1.msra.mxu0 0.0
  %85 = vmatprep.subr.mxu0 0.0
  %86 = vmatpush1.msra.mxu0 0.0
  %87 = vmatprep.subr.mxu0 0.0
  %88 = vmatpush1.msra.mxu0 0.0
  %89 = vmatprep.subr.mxu0 0.0
  %90 = vmatpush1.msra.mxu0 0.0
  %91 = vmatprep.subr.mxu0 0.0
  %92 = vmatpush1.msra.mxu0 0.0
  %93 = vmatprep.subr.mxu0 0.0
  %94 = vmatpush1.msra.mxu0 0.0
  %95 = vmatprep.subr.mxu0 0.0
  %96 = vmatpush1.msra.mxu0 0.0
  %97 = vmatprep.subr.mxu0 0.0
  %98 = vmatpush1.msra.mxu0 0.0
  %99 = vmatprep.subr.mxu0 0.0
  %100 = vmatpush1.msra.mxu0 0.0
  %101 = vmatprep.subr.mxu0 0.0
  %102 = vmatpush1.msra.mxu0 0.0
  %103 = vmatprep.subr.mxu0 0.0
  %104 = vmatpush1.msra.mxu0 0.0
  %105 = vmatprep.subr.mxu0 0.0
  %106 = vmatpush1.msra.mxu0 0.0
  %107 = vmatprep.subr.mxu0 0.0
  %108 = vmatpush1.msra.mxu0 0.0
  %109 = vmatprep.subr.mxu0 0.0
  %110 = vmatpush1.msra.mxu0 0.0
  %111 = vmatprep.subr.mxu0 0.0
  %112 = vmatpush1.msra.mxu0 0.0
  %113 = vmatprep.subr.mxu0 0.0
  %114 = vmatpush1.msra.mxu0 0.0
  %115 = vmatprep.subr.mxu0 0.0
  %116 = vmatpush1.msra.mxu0 0.0
  %117 = vmatprep.subr.mxu0 0.0
  %118 = vmatpush1.msra.mxu0 0.0
  %119 = vmatprep.mubr.f32.mxu0 0.0
  %120 = vmatmul.mubr.f32.gmra.mrb[0].mxu0 %v41
  %v121 = vpop.f32.mrb[0].mxu0
  %v122 = vadd.f32 0.0, %v121
  %v123 = vpop.f32.mrb[0].mxu0
  %124 = vmatprep.mubr.f32.mxu0 0.0
  %125 = vmatmul.mubr.f32.gmra.mrb[0].mxu0 %v44
  %v126 = vpop.f32.mrb[0].mxu0
  %v127 = vadd.f32 0.0, %v126
  %v128 = vpop.f32.mrb[0].mxu0
  %129 = vmatprep.mubr.f32.mxu0 0.0
  %130 = vmatmul.mubr.f32.gmra.mrb[0].mxu0 %v47
  %v131 = vpop.f32.mrb[0].mxu0
  %v132 = vadd.f32 0.0, %v131
  %v133 = vpop.f32.mrb[0].mxu0
  %134 = vmatprep.mubr.f32.mxu0 0.0
  %135 = vmatmul.mubr.f32.gmra.mrb[0].mxu0 %v50
  %v136 = vpop.f32.mrb[0].mxu0
  %v137 = vadd.f32 0.0, %v136
  %v138 = vpop.f32.mrb[0].mxu0
  %139 = vmatprep.mubr.f32.mxu0 0.0
  %140 = vmatmul.mubr.f32.gmra.mrb[0].mxu0 %v53
  %v141 = vpop.f32.mrb[0].mxu0
  %v142 = vadd.f32 0.0, %v141
  %v143 = vpop.f32.mrb[0].mxu0
  %144 = vdwg.mxu0
  %v146 = vsel %vm39, %v11, 0
  %v149 = vsel %vm39, %v12, 0
  %v152 = vsel %vm39, %v13, 0
  %v155 = vsel %vm39, %v14, 0
  %v158 = vsel %vm39, %v15, 0
  %160 = vmatprep.subr.mxu0 0.0
  %161 = vmatpush1.msra.mxu0 %v16
  %162 = vmatprep.subr.mxu0 0.0
  %163 = vmatpush1.msra.mxu0 %v17
  %164 = vmatprep.subr.mxu0 0.0
  %165 = vmatpush1.msra.mxu0 %v18
  %166 = vmatprep.subr.mxu0 0.0
  %167 = vmatpush1.msra.mxu0 %v19
  %168 = vmatprep.subr.mxu0 0.0
  %169 = vmatpush1.msra.mxu0 %v20
  %170 = vmatprep.subr.mxu0 0.0
  %171 = vmatpush1.msra.mxu0 %v21
  %172 = vmatprep.subr.mxu0 0.0
  %173 = vmatpush1.msra.mxu0 %v22
  %174 = vmatprep.subr.mxu0 0.0
  %175 = vmatpush1.msra.mxu0 %v23
  %176 = vmatprep.subr.mxu0 0.0
  %177 = vmatpush1.msra.mxu0 %v24
  %178 = vmatprep.subr.mxu0 0.0
  %179 = vmatpush1.msra.mxu0 0.0
  %180 = vmatprep.subr.mxu0 0.0
  %181 = vmatpush1.msra.mxu0 0.0
  %182 = vmatprep.subr.mxu0 0.0
  %183 = vmatpush1.msra.mxu0 0.0
  %184 = vmatprep.subr.mxu0 0.0
  %185 = vmatpush1.msra.mxu0 0.0
  %186 = vmatprep.subr.mxu0 0.0
  %187 = vmatpush1.msra.mxu0 0.0
  %188 = vmatprep.subr.mxu0 0.0
  %189 = vmatpush1.msra.mxu0 0.0
  %190 = vmatprep.subr.mxu0 0.0
  %191 = vmatpush1.msra.mxu0 0.0
  %192 = vmatprep.subr.mxu0 0.0
  %193 = vmatpush1.msra.mxu0 0.0
  %194 = vmatprep.subr.mxu0 0.0
  %195 = vmatpush1.msra.mxu0 0.0
  %196 = vmatprep.subr.mxu0 0.0
  %197 = vmatpush1.msra.mxu0 0.0
  %198 = vmatprep.subr.mxu0 0.0
  %199 = vmatpush1.msra.mxu0 0.0
  %200 = vmatprep.subr.mxu0 0.0
  %201 = vmatpush1.msra.mxu0 0.0
  %202 = vmatprep.subr.mxu0 0.0
  %203 = vmatpush1.msra.mxu0 0.0
  %204 = vmatprep.subr.mxu0 0.0
  %205 = vmatpush1.msra.mxu0 0.0
  %206 = vmatprep.subr.mxu0 0.0
  %207 = vmatpush1.msra.mxu0 0.0
  %208 = vmatprep.subr.mxu0 0.0
  %209 = vmatpush1.msra.mxu0 0.0
  %210 = vmatprep.subr.mxu0 0.0
  %211 = vmatpush1.msra.mxu0 0.0
  %212 = vmatprep.subr.mxu0 0.0
  %213 = vmatpush1.msra.mxu0 0.0
  %214 = vmatprep.subr.mxu0 0.0
  %215 = vmatpush1.msra.mxu0 0.0
  %216 = vmatprep.subr.mxu0 0.0
  %217 = vmatpush1.msra.mxu0 0.0
  %218 = vmatprep.subr.mxu0 0.0
  %219 = vmatpush1.msra.mxu0 0.0
  %220 = vmatprep.subr.mxu0 0.0
  %221 = vmatpush1.msra.mxu0 0.0
  %222 = vmatprep.subr.mxu0 0.0
  %223 = vmatpush1.msra.mxu0 0.0
  %224 = vmatprep.mubr.f32.mxu0 0.0
  %225 = vmatmul.mubr.f32.gmra.mrb[0].mxu0 %v146
  %v226 = vpop.f32.mrb[0].mxu0
  %v227 = vadd.f32 %v122, %v226
  %v228 = vpop.f32.mrb[0].mxu0
  %229 = vmatprep.mubr.f32.mxu0 0.0
  %230 = vmatmul.mubr.f32.gmra.mrb[0].mxu0 %v149
  %v231 = vpop.f32.mrb[0].mxu0
  %v232 = vadd.f32 %v127, %v231
  %v233 = vpop.f32.mrb[0].mxu0
  %234 = vmatprep.mubr.f32.mxu0 0.0
  %235 = vmatmul.mubr.f32.gmra.mrb[0].mxu0 %v152
  %v236 = vpop.f32.mrb[0].mxu0
  %v237 = vadd.f32 %v132, %v236
  %v238 = vpop.f32.mrb[0].mxu0
  %239 = vmatprep.mubr.f32.mxu0 0.0
  %240 = vmatmul.mubr.f32.gmra.mrb[0].mxu0 %v155
  %v241 = vpop.f32.mrb[0].mxu0
  %v242 = vadd.f32 %v137, %v241
  %v243 = vpop.f32.mrb[0].mxu0
  %244 = vmatprep.mubr.f32.mxu0 0.0
  %245 = vmatmul.mubr.f32.gmra.mrb[0].mxu0 %v158
  %v246 = vpop.f32.mrb[0].mxu0
  %v247 = vadd.f32 %v142, %v246
  %v248 = vpop.f32.mrb[0].mxu0
  %249 = vdwg.mxu0
  %v250 = vld [vmem:[%s0 + $0x2] sm:$0xff]
  %v251 = vld [vmem:[%s0 + $0xa] sm:$0xff]
  %v252 = vld [vmem:[%s0 + $0x12] sm:$0xff]
  %v253 = vld [vmem:[%s0 + $0x1a] sm:$0xff]
  %v254 = vld [vmem:[%s0 + $0x22] sm:$0x3]
  %v255 = vld [vmem:[%s1 + $0x90] sm:$0xff]
  %v256 = vld [vmem:[%s1 + $0x98] sm:$0xff]
  %v257 = vld [vmem:[%s1 + $0xa0] sm:$0xff]
  %v258 = vld [vmem:[%s1 + $0xa8] sm:$0xff]
  %v259 = vld [vmem:[%s1 + $0xb0] sm:$0xff]
  %v260 = vld [vmem:[%s1 + $0xb8] sm:$0xff]
  %v261 = vld [vmem:[%s1 + $0xc0] sm:$0xff]
  %v262 = vld [vmem:[%s1 + $0xc8] sm:$0xff]
  %v263 = vld [vmem:[%s1 + $0xd0] sm:$0xff]
  %v265 = vsel %vm39, %v250, 0
  %v268 = vsel %vm39, %v251, 0
  %v271 = vsel %vm39, %v252, 0
  %v274 = vsel %vm39, %v253, 0
  %v277 = vsel %vm39, %v254, 0
  %279 = vmatprep.subr.mxu0 0.0
  %280 = vmatpush1.msra.mxu0 %v255
  %281 = vmatprep.subr.mxu0 0.0
  %282 = vmatpush1.msra.mxu0 %v256
  %283 = vmatprep.subr.mxu0 0.0
  %284 = vmatpush1.msra.mxu0 %v257
  %285 = vmatprep.subr.mxu0 0.0
  %286 = vmatpush1.msra.mxu0 %v258
  %287 = vmatprep.subr.mxu0 0.0
  %288 = vmatpush1.msra.mxu0 %v259
  %289 = vmatprep.subr.mxu0 0.0
  %290 = vmatpush1.msra.mxu0 %v260
  %291 = vmatprep.subr.mxu0 0.0
  %292 = vmatpush1.msra.mxu0 %v261
  %293 = vmatprep.subr.mxu0 0.0
  %294 = vmatpush1.msra.mxu0 %v262
  %295 = vmatprep.subr.mxu0 0.0
  %296 = vmatpush1.msra.mxu0 %v263
  %297 = vmatprep.subr.mxu0 0.0
  %298 = vmatpush1.msra.mxu0 0.0
  %299 = vmatprep.subr.mxu0 0.0
  %300 = vmatpush1.msra.mxu0 0.0
  %301 = vmatprep.subr.mxu0 0.0
  %302 = vmatpush1.msra.mxu0 0.0
  %303 = vmatprep.subr.mxu0 0.0
  %304 = vmatpush1.msra.mxu0 0.0
  %305 = vmatprep.subr.mxu0 0.0
  %306 = vmatpush1.msra.mxu0 0.0
  %307 = vmatprep.subr.mxu0 0.0
  %308 = vmatpush1.msra.mxu0 0.0
  %309 = vmatprep.subr.mxu0 0.0
  %310 = vmatpush1.msra.mxu0 0.0
  %311 = vmatprep.subr.mxu0 0.0
  %312 = vmatpush1.msra.mxu0 0.0
  %313 = vmatprep.subr.mxu0 0.0
  %314 = vmatpush1.msra.mxu0 0.0
  %315 = vmatprep.subr.mxu0 0.0
  %316 = vmatpush1.msra.mxu0 0.0
  %317 = vmatprep.subr.mxu0 0.0
  %318 = vmatpush1.msra.mxu0 0.0
  %319 = vmatprep.subr.mxu0 0.0
  %320 = vmatpush1.msra.mxu0 0.0
  %321 = vmatprep.subr.mxu0 0.0
  %322 = vmatpush1.msra.mxu0 0.0
  %323 = vmatprep.subr.mxu0 0.0
  %324 = vmatpush1.msra.mxu0 0.0
  %325 = vmatprep.subr.mxu0 0.0
  %326 = vmatpush1.msra.mxu0 0.0
  %327 = vmatprep.subr.mxu0 0.0
  %328 = vmatpush1.msra.mxu0 0.0
  %329 = vmatprep.subr.mxu0 0.0
  %330 = vmatpush1.msra.mxu0 0.0
  %331 = vmatprep.subr.mxu0 0.0
  %332 = vmatpush1.msra.mxu0 0.0
  %333 = vmatprep.subr.mxu0 0.0
  %334 = vmatpush1.msra.mxu0 0.0
  %335 = vmatprep.subr.mxu0 0.0
  %336 = vmatpush1.msra.mxu0 0.0
  %337 = vmatprep.subr.mxu0 0.0
  %338 = vmatpush1.msra.mxu0 0.0
  %339 = vmatprep.subr.mxu0 0.0
  %340 = vmatpush1.msra.mxu0 0.0
  %341 = vmatprep.subr.mxu0 0.0
  %342 = vmatpush1.msra.mxu0 0.0
  %343 = vmatprep.mubr.f32.mxu0 0.0
  %344 = vmatmul.mubr.f32.gmra.mrb[0].mxu0 %v265
  %v345 = vpop.f32.mrb[0].mxu0
  %v346 = vadd.f32 0.0, %v345
  %v347 = vpop.f32.mrb[0].mxu0
  %348 = vmatprep.mubr.f32.mxu0 0.0
  %349 = vmatmul.mubr.f32.gmra.mrb[0].mxu0 %v268
  %v350 = vpop.f32.mrb[0].mxu0
  %v351 = vadd.f32 0.0, %v350
  %v352 = vpop.f32.mrb[0].mxu0
  %353 = vmatprep.mubr.f32.mxu0 0.0
  %354 = vmatmul.mubr.f32.gmra.mrb[0].mxu0 %v271
  %v355 = vpop.f32.mrb[0].mxu0
  %v356 = vadd.f32 0.0, %v355
  %v357 = vpop.f32.mrb[0].mxu0
  %358 = vmatprep.mubr.f32.mxu0 0.0
  %359 = vmatmul.mubr.f32.gmra.mrb[0].mxu0 %v274
  %v360 = vpop.f32.mrb[0].mxu0
  %v361 = vadd.f32 0.0, %v360
  %v362 = vpop.f32.mrb[0].mxu0
  %363 = vmatprep.mubr.f32.mxu0 0.0
  %364 = vmatmul.mubr.f32.gmra.mrb[0].mxu0 %v277
  %v365 = vpop.f32.mrb[0].mxu0
  %v366 = vadd.f32 0.0, %v365
  %v367 = vpop.f32.mrb[0].mxu0
  %368 = vdwg.mxu0
  %v369 = vadd.f32 %v227, %v346
  %v370 = vadd.f32 %v232, %v351
  %v371 = vadd.f32 %v237, %v356
  %v372 = vadd.f32 %v242, %v361
  %v373 = vadd.f32 %v247, %v366
  %v374 = vld [vmem:[%s1 + $0x1b8] sm:$0x1]
  %v375 = vlaneseq
  %v376 = vshrl.u32 %v375, 7
  %v377 = vsub.s32 0, %v376
  %v378 = vrot.slane %v374, %v377
  %v379 = vadd.f32 %v369, %v378
  %v380 = vadd.f32 %v370, %v378
  %v381 = vadd.f32 %v371, %v378
  %v382 = vadd.f32 %v372, %v378
  %v383 = vadd.f32 %v373, %v378
  %v384 = vmax.f32 %v379, 0.0
  %v385 = vmax.f32 %v380, 0.0
  %v386 = vmax.f32 %v381, 0.0
  %v387 = vmax.f32 %v382, 0.0
  %v388 = vmax.f32 %v383, 0.0
  %v389 = vld [vmem:[%s1 + $0x158] sm:$0xff]
  %vm390 = vcmask 277504
  %v392 = vsel %vm390, %v389, 0
  %vm394 = vcmask 1041408
  %v396 = vsel %vm394, %v388, 0
  %398 = vmatprep.subr.mxu0 0.0
  %399 = vmatpush1.msra.mxu0 %v384
  %400 = vmatprep.subr.mxu0 0.0
  %401 = vmatpush1.msra.mxu0 %v385
  %402 = vmatprep.subr.mxu0 0.0
  %403 = vmatpush1.msra.mxu0 %v386
  %404 = vmatprep.subr.mxu0 0.0
  %405 = vmatpush1.msra.mxu0 %v387
  %406 = vmatprep.subr.mxu0 0.0
  %407 = vmatpush1.msra.mxu0 %v396
  %408 = vmatprep.subr.mxu0 0.0
  %409 = vmatpush1.msra.mxu0 0.0
  %410 = vmatprep.subr.mxu0 0.0
  %411 = vmatpush1.msra.mxu0 0.0
  %412 = vmatprep.subr.mxu0 0.0
  %413 = vmatpush1.msra.mxu0 0.0
  %414 = vmatprep.subr.mxu0 0.0
  %415 = vmatpush1.msra.mxu0 0.0
  %416 = vmatprep.subr.mxu0 0.0
  %417 = vmatpush1.msra.mxu0 0.0
  %418 = vmatprep.subr.mxu0 0.0
  %419 = vmatpush1.msra.mxu0 0.0
  %420 = vmatprep.subr.mxu0 0.0
  %421 = vmatpush1.msra.mxu0 0.0
  %422 = vmatprep.subr.mxu0 0.0
  %423 = vmatpush1.msra.mxu0 0.0
  %424 = vmatprep.subr.mxu0 0.0
  %425 = vmatpush1.msra.mxu0 0.0
  %426 = vmatprep.subr.mxu0 0.0
  %427 = vmatpush1.msra.mxu0 0.0
  %428 = vmatprep.subr.mxu0 0.0
  %429 = vmatpush1.msra.mxu0 0.0
  %430 = vmatprep.subr.mxu0 0.0
  %431 = vmatpush1.msra.mxu0 0.0
  %432 = vmatprep.subr.mxu0 0.0
  %433 = vmatpush1.msra.mxu0 0.0
  %434 = vmatprep.subr.mxu0 0.0
  %435 = vmatpush1.msra.mxu0 0.0
  %436 = vmatprep.subr.mxu0 0.0
  %437 = vmatpush1.msra.mxu0 0.0
  %438 = vmatprep.subr.mxu0 0.0
  %439 = vmatpush1.msra.mxu0 0.0
  %440 = vmatprep.subr.mxu0 0.0
  %441 = vmatpush1.msra.mxu0 0.0
  %442 = vmatprep.subr.mxu0 0.0
  %443 = vmatpush1.msra.mxu0 0.0
  %444 = vmatprep.subr.mxu0 0.0
  %445 = vmatpush1.msra.mxu0 0.0
  %446 = vmatprep.subr.mxu0 0.0
  %447 = vmatpush1.msra.mxu0 0.0
  %448 = vmatprep.subr.mxu0 0.0
  %449 = vmatpush1.msra.mxu0 0.0
  %450 = vmatprep.subr.mxu0 0.0
  %451 = vmatpush1.msra.mxu0 0.0
  %452 = vmatprep.subr.mxu0 0.0
  %453 = vmatpush1.msra.mxu0 0.0
  %454 = vmatprep.subr.mxu0 0.0
  %455 = vmatpush1.msra.mxu0 0.0
  %456 = vmatprep.subr.mxu0 0.0
  %457 = vmatpush1.msra.mxu0 0.0
  %458 = vmatprep.subr.mxu0 0.0
  %459 = vmatpush1.msra.mxu0 0.0
  %460 = vmatprep.subr.mxu0 0.0
  %461 = vmatpush1.msra.mxu0 0.0
  %462 = vmatprep.mubr.f32.mxu0 0.0
  %463 = vmatmul.mubr.f32.gmra.mrb[0].mxu0 %v392
  %v464 = vpop.f32.mrb[0].mxu0
  %v465 = vadd.f32 0.0, %v464
  %v466 = vpop.f32.mrb[0].mxu0
  %467 = vdwg.mxu0
  %v468 = vld [vmem:[%s1 + $0xd8] sm:$0xff]
  %v469 = vld [vmem:[%s1 + $0xe0] sm:$0xff]
  %v470 = vld [vmem:[%s1 + $0xe8] sm:$0xff]
  %v471 = vld [vmem:[%s1 + $0xf0] sm:$0xff]
  %v472 = vld [vmem:[%s1 + $0xf8] sm:$0xff]
  %v473 = vld [vmem:[%s1 + $0x100] sm:$0xff]
  %v474 = vld [vmem:[%s1 + $0x108] sm:$0xff]
  %v475 = vld [vmem:[%s1 + $0x110] sm:$0xff]
  %v476 = vld [vmem:[%s1 + $0x118] sm:$0xff]
  %v477 = vld [vmem:[%s1 + $0x120] sm:$0xff]
  %v478 = vld [vmem:[%s1 + $0x128] sm:$0xff]
  %v479 = vld [vmem:[%s1 + $0x130] sm:$0xff]
  %v480 = vld [vmem:[%s1 + $0x138] sm:$0xff]
  %v481 = vld [vmem:[%s1 + $0x140] sm:$0xff]
  %v482 = vld [vmem:[%s1 + $0x148] sm:$0xff]
  %v483 = vld [vmem:[%s1 + $0x150] sm:$0xff]
  %484 = vmatprep.subr.mxu0 0.0
  %485 = vmatpush1.msra.mxu0 %v468
  %486 = vmatprep.subr.mxu0 0.0
  %487 = vmatpush1.msra.mxu0 %v469
  %488 = vmatprep.subr.mxu0 0.0
  %489 = vmatpush1.msra.mxu0 %v470
  %490 = vmatprep.subr.mxu0 0.0
  %491 = vmatpush1.msra.mxu0 %v471
  %492 = vmatprep.subr.mxu0 0.0
  %493 = vmatpush1.msra.mxu0 %v472
  %494 = vmatprep.subr.mxu0 0.0
  %495 = vmatpush1.msra.mxu0 %v473
  %496 = vmatprep.subr.mxu0 0.0
  %497 = vmatpush1.msra.mxu0 %v474
  %498 = vmatprep.subr.mxu0 0.0
  %499 = vmatpush1.msra.mxu0 %v475
  %500 = vmatprep.subr.mxu0 0.0
  %501 = vmatpush1.msra.mxu0 %v476
  %502 = vmatprep.subr.mxu0 0.0
  %503 = vmatpush1.msra.mxu0 %v477
  %504 = vmatprep.subr.mxu0 0.0
  %505 = vmatpush1.msra.mxu0 %v478
  %506 = vmatprep.subr.mxu0 0.0
  %507 = vmatpush1.msra.mxu0 %v479
  %508 = vmatprep.subr.mxu0 0.0
  %509 = vmatpush1.msra.mxu0 %v480
  %510 = vmatprep.subr.mxu0 0.0
  %511 = vmatpush1.msra.mxu0 %v481
  %512 = vmatprep.subr.mxu0 0.0
  %513 = vmatpush1.msra.mxu0 %v482
  %514 = vmatprep.subr.mxu0 0.0
  %515 = vmatpush1.msra.mxu0 %v483
  %516 = vmatprep.subr.mxu0 0.0
  %517 = vmatpush1.msra.mxu0 0.0
  %518 = vmatprep.subr.mxu0 0.0
  %519 = vmatpush1.msra.mxu0 0.0
  %520 = vmatprep.subr.mxu0 0.0
  %521 = vmatpush1.msra.mxu0 0.0
  %522 = vmatprep.subr.mxu0 0.0
  %523 = vmatpush1.msra.mxu0 0.0
  %524 = vmatprep.subr.mxu0 0.0
  %525 = vmatpush1.msra.mxu0 0.0
  %526 = vmatprep.subr.mxu0 0.0
  %527 = vmatpush1.msra.mxu0 0.0
  %528 = vmatprep.subr.mxu0 0.0
  %529 = vmatpush1.msra.mxu0 0.0
  %530 = vmatprep.subr.mxu0 0.0
  %531 = vmatpush1.msra.mxu0 0.0
  %532 = vmatprep.subr.mxu0 0.0
  %533 = vmatpush1.msra.mxu0 0.0
  %534 = vmatprep.subr.mxu0 0.0
  %535 = vmatpush1.msra.mxu0 0.0
  %536 = vmatprep.subr.mxu0 0.0
  %537 = vmatpush1.msra.mxu0 0.0
  %538 = vmatprep.subr.mxu0 0.0
  %539 = vmatpush1.msra.mxu0 0.0
  %540 = vmatprep.subr.mxu0 0.0
  %541 = vmatpush1.msra.mxu0 0.0
  %542 = vmatprep.subr.mxu0 0.0
  %543 = vmatpush1.msra.mxu0 0.0
  %544 = vmatprep.subr.mxu0 0.0
  %545 = vmatpush1.msra.mxu0 0.0
  %546 = vmatprep.subr.mxu0 0.0
  %547 = vmatpush1.msra.mxu0 0.0
  %548 = vmatprep.mubr.f32.mxu0 0.0
  %549 = vmatmul.mubr.f32.gmra.mrb[0].mxu0 %v465
  %v550 = vpop.f32.mrb[0].mxu0
  %v551 = vadd.f32 0.0, %v550
  %v552 = vpop.f32.mrb[0].mxu0
  %553 = vdwg.mxu0
  %v554 = vld [vmem:[%s1 + $0x160] sm:$0xff]
  %v555 = vld [vmem:[%s1 + $0x168] sm:$0xff]
  %v556 = vld [vmem:[%s1 + $0x170] sm:$0xff]
  %v557 = vld [vmem:[%s1 + $0x178] sm:$0xff]
  %vm558 = vcmask 261120
  %v560 = vsel %vm558, %v551, 0
  %562 = vmatprep.subr.mxu0 0.0
  %563 = vmatpush1.msra.mxu0 %v554
  %564 = vmatprep.subr.mxu0 0.0
  %565 = vmatpush1.msra.mxu0 %v555
  %566 = vmatprep.subr.mxu0 0.0
  %567 = vmatpush1.msra.mxu0 %v556
  %568 = vmatprep.subr.mxu0 0.0
  %569 = vmatpush1.msra.mxu0 %v557
  %570 = vmatprep.subr.mxu0 0.0
  %571 = vmatpush1.msra.mxu0 0.0
  %572 = vmatprep.subr.mxu0 0.0
  %573 = vmatpush1.msra.mxu0 0.0
  %574 = vmatprep.subr.mxu0 0.0
  %575 = vmatpush1.msra.mxu0 0.0
  %576 = vmatprep.subr.mxu0 0.0
  %577 = vmatpush1.msra.mxu0 0.0
  %578 = vmatprep.subr.mxu0 0.0
  %579 = vmatpush1.msra.mxu0 0.0
  %580 = vmatprep.subr.mxu0 0.0
  %581 = vmatpush1.msra.mxu0 0.0
  %582 = vmatprep.subr.mxu0 0.0
  %583 = vmatpush1.msra.mxu0 0.0
  %584 = vmatprep.subr.mxu0 0.0
  %585 = vmatpush1.msra.mxu0 0.0
  %586 = vmatprep.subr.mxu0 0.0
  %587 = vmatpush1.msra.mxu0 0.0
  %588 = vmatprep.subr.mxu0 0.0
  %589 = vmatpush1.msra.mxu0 0.0
  %590 = vmatprep.subr.mxu0 0.0
  %591 = vmatpush1.msra.mxu0 0.0
  %592 = vmatprep.subr.mxu0 0.0
  %593 = vmatpush1.msra.mxu0 0.0
  %594 = vmatprep.subr.mxu0 0.0
  %595 = vmatpush1.msra.mxu0 0.0
  %596 = vmatprep.subr.mxu0 0.0
  %597 = vmatpush1.msra.mxu0 0.0
  %598 = vmatprep.subr.mxu0 0.0
  %599 = vmatpush1.msra.mxu0 0.0
  %600 = vmatprep.subr.mxu0 0.0
  %601 = vmatpush1.msra.mxu0 0.0
  %602 = vmatprep.subr.mxu0 0.0
  %603 = vmatpush1.msra.mxu0 0.0
  %604 = vmatprep.subr.mxu0 0.0
  %605 = vmatpush1.msra.mxu0 0.0
  %606 = vmatprep.subr.mxu0 0.0
  %607 = vmatpush1.msra.mxu0 0.0
  %608 = vmatprep.subr.mxu0 0.0
  %609 = vmatpush1.msra.mxu0 0.0
  %610 = vmatprep.subr.mxu0 0.0
  %611 = vmatpush1.msra.mxu0 0.0
  %612 = vmatprep.subr.mxu0 0.0
  %613 = vmatpush1.msra.mxu0 0.0
  %614 = vmatprep.subr.mxu0 0.0
  %615 = vmatpush1.msra.mxu0 0.0
  %616 = vmatprep.subr.mxu0 0.0
  %617 = vmatpush1.msra.mxu0 0.0
  %618 = vmatprep.subr.mxu0 0.0
  %619 = vmatpush1.msra.mxu0 0.0
  %620 = vmatprep.subr.mxu0 0.0
  %621 = vmatpush1.msra.mxu0 0.0
  %622 = vmatprep.subr.mxu0 0.0
  %623 = vmatpush1.msra.mxu0 0.0
  %624 = vmatprep.subr.mxu0 0.0
  %625 = vmatpush1.msra.mxu0 0.0
  %626 = vmatprep.mubr.f32.mxu0 0.0
  %627 = vmatmul.mubr.f32.gmra.mrb[0].mxu0 %v560
  %v628 = vpop.f32.mrb[0].mxu0
  %v629 = vadd.f32 0.0, %v628
  %v630 = vpop.f32.mrb[0].mxu0
  %631 = vdwg.mxu0
  %v632 = vld [vmem:[%s1 + $0x180] sm:$0xff]
  %v633 = vmul.f32 %v629, %v632
  %v634 = vld [vmem:[%s1 + $0x188] sm:$0xff]
  %v635 = vld [vmem:[%s1 + $0x190] sm:$0xff]
  %v636 = vld [vmem:[%s1 + $0x198] sm:$0xff]
  %v637 = vld [vmem:[%s1 + $0x1a0] sm:$0xff]
  %v638 = vld [vmem:[%s1 + $0x1a8] sm:$0xff]
  %vm639 = vcmask 326656
  %v641 = vsel %vm639, %v633, 0
  %643 = vmatprep.subr.mxu0 0.0
  %644 = vmatpush1.msra.mxu0 %v634
  %645 = vmatprep.subr.mxu0 0.0
  %646 = vmatpush1.msra.mxu0 %v635
  %647 = vmatprep.subr.mxu0 0.0
  %648 = vmatpush1.msra.mxu0 %v636
  %649 = vmatprep.subr.mxu0 0.0
  %650 = vmatpush1.msra.mxu0 %v637
  %651 = vmatprep.subr.mxu0 0.0
  %652 = vmatpush1.msra.mxu0 %v638
  %653 = vmatprep.subr.mxu0 0.0
  %654 = vmatpush1.msra.mxu0 0.0
  %655 = vmatprep.subr.mxu0 0.0
  %656 = vmatpush1.msra.mxu0 0.0
  %657 = vmatprep.subr.mxu0 0.0
  %658 = vmatpush1.msra.mxu0 0.0
  %659 = vmatprep.subr.mxu0 0.0
  %660 = vmatpush1.msra.mxu0 0.0
  %661 = vmatprep.subr.mxu0 0.0
  %662 = vmatpush1.msra.mxu0 0.0
  %663 = vmatprep.subr.mxu0 0.0
  %664 = vmatpush1.msra.mxu0 0.0
  %665 = vmatprep.subr.mxu0 0.0
  %666 = vmatpush1.msra.mxu0 0.0
  %667 = vmatprep.subr.mxu0 0.0
  %668 = vmatpush1.msra.mxu0 0.0
  %669 = vmatprep.subr.mxu0 0.0
  %670 = vmatpush1.msra.mxu0 0.0
  %671 = vmatprep.subr.mxu0 0.0
  %672 = vmatpush1.msra.mxu0 0.0
  %673 = vmatprep.subr.mxu0 0.0
  %674 = vmatpush1.msra.mxu0 0.0
  %675 = vmatprep.subr.mxu0 0.0
  %676 = vmatpush1.msra.mxu0 0.0
  %677 = vmatprep.subr.mxu0 0.0
  %678 = vmatpush1.msra.mxu0 0.0
  %679 = vmatprep.subr.mxu0 0.0
  %680 = vmatpush1.msra.mxu0 0.0
  %681 = vmatprep.subr.mxu0 0.0
  %682 = vmatpush1.msra.mxu0 0.0
  %683 = vmatprep.subr.mxu0 0.0
  %684 = vmatpush1.msra.mxu0 0.0
  %685 = vmatprep.subr.mxu0 0.0
  %686 = vmatpush1.msra.mxu0 0.0
  %687 = vmatprep.subr.mxu0 0.0
  %688 = vmatpush1.msra.mxu0 0.0
  %689 = vmatprep.subr.mxu0 0.0
  %690 = vmatpush1.msra.mxu0 0.0
  %691 = vmatprep.subr.mxu0 0.0
  %692 = vmatpush1.msra.mxu0 0.0
  %693 = vmatprep.subr.mxu0 0.0
  %694 = vmatpush1.msra.mxu0 0.0
  %695 = vmatprep.subr.mxu0 0.0
  %696 = vmatpush1.msra.mxu0 0.0
  %697 = vmatprep.subr.mxu0 0.0
  %698 = vmatpush1.msra.mxu0 0.0
  %699 = vmatprep.subr.mxu0 0.0
  %700 = vmatpush1.msra.mxu0 0.0
  %701 = vmatprep.subr.mxu0 0.0
  %702 = vmatpush1.msra.mxu0 0.0
  %703 = vmatprep.subr.mxu0 0.0
  %704 = vmatpush1.msra.mxu0 0.0
  %705 = vmatprep.subr.mxu0 0.0
  %706 = vmatpush1.msra.mxu0 0.0
  %707 = vmatprep.mubr.f32.mxu0 0.0
  %708 = vmatmul.mubr.f32.gmra.mrb[0].mxu0 %v641
  %v709 = vpop.f32.mrb[0].mxu0
  %v710 = vadd.f32 0.0, %v709
  %v711 = vpop.f32.mrb[0].mxu0
  %712 = vdwg.mxu0
  %v713 = vld [vmem:[%s1 + $0x1b0] sm:$0xff]
  %v714 = vld [vmem:[%s1 + $0x1c0] sm:$0x1]
  %v715 = vlaneseq
  %v716 = vshrl.u32 %v715, 7
  %v717 = vsub.s32 0, %v716
  %v718 = vrot.slane %v714, %v717
  %vm719 = vcmask 64512
  %v721 = vsel %vm719, %v713, 0
  %723 = vmatprep.subr.mxu0 0.0
  %724 = vmatpush1.msra.mxu0 %v710
  %725 = vmatprep.subr.mxu0 0.0
  %726 = vmatpush1.msra.mxu0 0.0
  %727 = vmatprep.subr.mxu0 0.0
  %728 = vmatpush1.msra.mxu0 0.0
  %729 = vmatprep.subr.mxu0 0.0
  %730 = vmatpush1.msra.mxu0 0.0
  %731 = vmatprep.subr.mxu0 0.0
  %732 = vmatpush1.msra.mxu0 0.0
  %733 = vmatprep.subr.mxu0 0.0
  %734 = vmatpush1.msra.mxu0 0.0
  %735 = vmatprep.subr.mxu0 0.0
  %736 = vmatpush1.msra.mxu0 0.0
  %737 = vmatprep.subr.mxu0 0.0
  %738 = vmatpush1.msra.mxu0 0.0
  %739 = vmatprep.subr.mxu0 0.0
  %740 = vmatpush1.msra.mxu0 0.0
  %741 = vmatprep.subr.mxu0 0.0
  %742 = vmatpush1.msra.mxu0 0.0
  %743 = vmatprep.subr.mxu0 0.0
  %744 = vmatpush1.msra.mxu0 0.0
  %745 = vmatprep.subr.mxu0 0.0
  %746 = vmatpush1.msra.mxu0 0.0
  %747 = vmatprep.subr.mxu0 0.0
  %748 = vmatpush1.msra.mxu0 0.0
  %749 = vmatprep.subr.mxu0 0.0
  %750 = vmatpush1.msra.mxu0 0.0
  %751 = vmatprep.subr.mxu0 0.0
  %752 = vmatpush1.msra.mxu0 0.0
  %753 = vmatprep.subr.mxu0 0.0
  %754 = vmatpush1.msra.mxu0 0.0
  %755 = vmatprep.subr.mxu0 0.0
  %756 = vmatpush1.msra.mxu0 0.0
  %757 = vmatprep.subr.mxu0 0.0
  %758 = vmatpush1.msra.mxu0 0.0
  %759 = vmatprep.subr.mxu0 0.0
  %760 = vmatpush1.msra.mxu0 0.0
  %761 = vmatprep.subr.mxu0 0.0
  %762 = vmatpush1.msra.mxu0 0.0
  %763 = vmatprep.subr.mxu0 0.0
  %764 = vmatpush1.msra.mxu0 0.0
  %765 = vmatprep.subr.mxu0 0.0
  %766 = vmatpush1.msra.mxu0 0.0
  %767 = vmatprep.subr.mxu0 0.0
  %768 = vmatpush1.msra.mxu0 0.0
  %769 = vmatprep.subr.mxu0 0.0
  %770 = vmatpush1.msra.mxu0 0.0
  %771 = vmatprep.subr.mxu0 0.0
  %772 = vmatpush1.msra.mxu0 0.0
  %773 = vmatprep.subr.mxu0 0.0
  %774 = vmatpush1.msra.mxu0 0.0
  %775 = vmatprep.subr.mxu0 0.0
  %776 = vmatpush1.msra.mxu0 0.0
  %777 = vmatprep.subr.mxu0 0.0
  %778 = vmatpush1.msra.mxu0 0.0
  %779 = vmatprep.subr.mxu0 0.0
  %780 = vmatpush1.msra.mxu0 0.0
  %781 = vmatprep.subr.mxu0 0.0
  %782 = vmatpush1.msra.mxu0 0.0
  %783 = vmatprep.subr.mxu0 0.0
  %784 = vmatpush1.msra.mxu0 0.0
  %785 = vmatprep.subr.mxu0 0.0
  %786 = vmatpush1.msra.mxu0 0.0
  %787 = vmatprep.mubr.f32.mxu0 0.0
  %788 = vmatmul.mubr.f32.gmra.mrb[0].mxu0 %v721
  %v789 = vpop.f32.mrb[0].mxu0
  %v790 = vadd.f32 %v718, %v789
  %v791 = vpop.f32.mrb[0].mxu0
  %792 = vdwg.mxu0
  %793 = vst [vmem:[%s2] sm:$0xff] %v790
  // Predicated region
  $region10: #{custom_model_forward.1} parent=0 // pred_check
    _
  $region11: #{custom_model_forward.1} parent=0 // pred_check_branch
    %795 = sbr.rel (0) target = $region13
  $region12: #{custom_model_forward.1} parent=0 // pred_region
    _
  $region13: #{custom_model_forward.1} parent=0 // pred_fallthru
    _
  // Predicated region
  $region14: #{custom_model_forward.1} parent=0 // pred_check
    _
  $region15: #{custom_model_forward.1} parent=0 // pred_check_branch
    %797 = sbr.rel (0) target = $region17
  $region16: #{custom_model_forward.1} parent=0 // pred_region
    _
  $region17: #{custom_model_forward.1} parent=0 // pred_fallthru
    _

</llo_original>
